<compile_context>
chip_gen: v6e
topology: v6e:2x2x1
jax: 0.10.0
libtpu: 0.0.40
codegen_flags: <defaults>
</compile_context>

<pallas_src>
import functools

import jax
import jax.numpy as jnp
from jax import lax
from jax.experimental import pallas as pl
from jax.experimental.pallas import tpu as pltpu


def _pick_tile(n, candidates):
    """Largest candidate that divides n; fall back to the full extent."""
    for c in candidates:
        if n % c == 0:
            return c
    return n


def _ntxent_kernel(pos_ref, q_ref, kt_ref, loss_ref, den_ref, *, row_tile, key_tile):
    """One (row-tile, key-tile) step of the NT-Xent denominator sweep."""
    r = pl.program_id(0)
    k = pl.program_id(1)

    @pl.when(k == 0)
    def _init():
        den_ref[...] = jnp.zeros_like(den_ref)

    # q already carries the 1/temperature scale, so logits == sim / t.
    logits = jnp.dot(q_ref[...], kt_ref[...], preferred_element_type=jnp.float32)

    # Mask the self-similarity terms (the diagonal of the full 2B x 2B matrix)
    # with a single iota compare in global coordinates.
    row_ids = lax.broadcasted_iota(jnp.int32, (row_tile, key_tile), 0) + r * row_tile
    col_ids = lax.broadcasted_iota(jnp.int32, (row_tile, key_tile), 1) + k * key_tile
    # Cosine similarities are bounded by 1, so exp(sim/t) cannot overflow f32
    # for sane temperatures (same behavior as the PyTorch reference: no shift).
    e = jnp.where(row_ids == col_ids, 0.0, jnp.exp(logits))
    # TODO(synk): on v6e/v7x the EUP supports bf16; a bf16 exp with an f32
    # row-sum would ~double the binding EUP throughput at ~1e-3 accuracy.

    # Flash-style running denominator (one VPU add path, one XLU reduce).
    den_ref[...] += jnp.sum(e, axis=1, keepdims=True)

    @pl.when(k == pl.num_programs(1) - 1)
    def _finalize():
        # -log(exp(pos/t) / den) == log(den) - pos/t   (pos_ref is already pos/t)
        loss_ref[...] = jnp.log(den_ref[...]) - pos_ref[...]


def contrastive_loss(emb_i, emb_j, temperature=0.5):
    """Pallas implementation of ContrastiveLoss.forward(emb_i, emb_j)."""
    assert emb_i.shape == emb_j.shape and emb_i.ndim == 2
    B, D = emb_i.shape
    N = 2 * B
    inv_t = jnp.float32(1.0) / jnp.asarray(temperature, jnp.float32)

    # ---- grid-invariant O(B*D) prep, hoisted out of the Pallas grid ---------
    # Done exactly once (plain XLA, as per the review); all O(B^2*D) matmul and
    # O(B^2) exp work lives in the Pallas kernel below.
    zi = emb_i.astype(jnp.float32)
    zj = emb_j.astype(jnp.float32)
    zi = zi * lax.rsqrt(jnp.maximum(jnp.sum(zi * zi, axis=1, keepdims=True), 1e-24))
    zj = zj * lax.rsqrt(jnp.maximum(jnp.sum(zj * zj, axis=1, keepdims=True), 1e-24))
    # Positives (identical value for the top/bottom halves), pre-scaled by 1/t.
    pos = jnp.sum(zi * zj, axis=1, keepdims=True) * inv_t                # [B, 1]
    pos2 = jnp.concatenate([pos, pos], axis=0)                           # [2B, 1]
    z = jnp.concatenate([zi, zj], axis=0)                                # [2B, D]
    mxu_dtype = jnp.bfloat16 if emb_i.dtype == jnp.bfloat16 else jnp.float32
    q = (z * inv_t).astype(mxu_dtype)       # query operand, 1/t folded in
    kt = z.T.astype(mxu_dtype)              # [D, 2B] stationary transposed keys

    # ---- tiling --------------------------------------------------------------
    TM = _pick_tile(N, (128, 64, 32, 16, 8))   # query rows / step (128 is also
                                               # a full tile on the v5e MXU)
    TN = _pick_tile(N, (512, 256, 128))        # key columns / step (lane-aligned)
    num_row_tiles = N // TM
    num_key_tiles = N // TN

    # ---- VMEM budget (double-buffered inputs + temporaries), with headroom ---
    isz = 2 if mxu_dtype == jnp.bfloat16 else 4
    est = (2 * (TM * D + D * TN) * isz          # q / kt tiles, double-buffered
           + 2 * TM * 4 + 2 * TM * 4            # pos tiles + loss output buffers
           + TM * 4                             # denominator scratch
           + 6 * TM * TN * 4)                   # logits / exp / mask temporaries
    vmem_limit = int(min(64 * 2 ** 20, max(32 * 2 ** 20, 2 * est)))

    kernel = functools.partial(_ntxent_kernel, row_tile=TM, key_tile=TN)
    loss_rows = pl.pallas_call(
        kernel,
        out_shape=jax.ShapeDtypeStruct((N, 1), jnp.float32),
        grid=(num_row_tiles, num_key_tiles),
        in_specs=[
            pl.BlockSpec((TM, 1), lambda r, k: (r, 0)),   # positives / t
            pl.BlockSpec((TM, D), lambda r, k: (r, 0)),   # scaled queries
            pl.BlockSpec((D, TN), lambda r, k: (0, k)),   # transposed keys
        ],
        out_specs=pl.BlockSpec((TM, 1), lambda r, k: (r, 0)),
        scratch_shapes=[pltpu.VMEM((TM, 1), jnp.float32)],
        compiler_params=pltpu.CompilerParams(
            dimension_semantics=("parallel", "arbitrary"),
            vmem_limit_bytes=vmem_limit),
    )(pos2, q, kt)

    # Final tiny reduction over 2B scalars stays in plain JAX.
    return jnp.sum(loss_rows) / (2.0 * B)


def _reference_loss(emb_i, emb_j, temperature=0.5):
    """Plain-JAX mirror of the PyTorch forward for a sanity check."""
    B = emb_i.shape[0]
    N = 2 * B
    zi = emb_i / jnp.maximum(jnp.linalg.norm(emb_i, axis=1, keepdims=True), 1e-12)
    zj = emb_j / jnp.maximum(jnp.linalg.norm(emb_j, axis=1, keepdims=True), 1e-12)
    reps = jnp.concatenate([zi, zj], axis=0)
    sim = reps @ reps.T
    sim_ij = jnp.diagonal(sim, offset=B)
    sim_ji = jnp.diagonal(sim, offset=-B)
    positives = jnp.concatenate([sim_ij, sim_ji], axis=0)
    nominator = jnp.exp(positives / temperature)
    neg_mask = 1.0 - jnp.eye(N, dtype=jnp.float32)
    denominator = jnp.sum(neg_mask * jnp.exp(sim / temperature), axis=1)
    return jnp.sum(-jnp.log(nominator / denominator)) / (2.0 * B)


if __name__ == "__main__":
    batch_size = 8       # module's self.batch_size; similarity matrix is 16x16
    emb_dim = 32
    temperature = 0.5

    key = jax.random.PRNGKey(0)
    k1, k2 = jax.random.split(key)
    emb_i = jax.random.normal(k1, (batch_size, emb_dim), dtype=jnp.float32)
    emb_j = jax.random.normal(k2, (batch_size, emb_dim), dtype=jnp.float32)

    loss = contrastive_loss(emb_i, emb_j, temperature)
    loss = jax.block_until_ready(loss)

    ref = _reference_loss(emb_i, emb_j, temperature)
    assert jnp.allclose(loss, ref, rtol=1e-5, atol=1e-5), (loss, ref)

    print("KERNEL_OK")
</pallas_src>

<mosaic_0001>
module attributes {stable_mosaic.version = 11 : i64} {
  func.func @_ntxent_kernel(%arg0: i32, %arg1: i32, %arg2: memref<16x1xf32, #tpu.memory_space<vmem>>, %arg3: memref<16x32xf32, #tpu.memory_space<vmem>>, %arg4: memref<32x16xf32, #tpu.memory_space<vmem>>, %arg5: memref<16x1xf32, #tpu.memory_space<vmem>>, %arg6: memref<16x1xf32, #tpu.memory_space<vmem>>) attributes {dimension_semantics = [#tpu.dimension_semantics<parallel>, #tpu.dimension_semantics<arbitrary>], iteration_bounds = array<i64: 1, 1>, scalar_prefetch = 0 : i64, scratch_operands = 1 : i64, tpu.core_type = #tpu.core_type<tc>, window_params = [{transform_indices = @transform_0, window_bounds = array<i64: 16, 1>}, {transform_indices = @transform_1, window_bounds = array<i64: 16, 32>}, {transform_indices = @transform_2, window_bounds = array<i64: 32, 16>}, {transform_indices = @transform_3, window_bounds = array<i64: 16, 1>}]} {
    %c0_i32 = arith.constant 0 : i32
    %0 = arith.cmpi eq, %arg1, %c0_i32 : i32
    %1 = arith.extui %0 : i1 to i32
    %c0_i32_0 = arith.constant 0 : i32
    %2 = arith.cmpi ne, %1, %c0_i32_0 : i32
    scf.if %2 {
      %cst_13 = arith.constant 0.000000e+00 : f32
      %26 = vector.broadcast %cst_13 : f32 to vector<16x1xf32>
      %c0_14 = arith.constant 0 : index
      %c0_15 = arith.constant 0 : index
      %27 = vector.load %arg6[%c0_14, %c0_15] : memref<16x1xf32, #tpu.memory_space<vmem>>, vector<16x1xf32>
      tpu.vector_store %arg6[%c0_14, %c0_15], %26 {strides = array<i32>} : memref<16x1xf32, #tpu.memory_space<vmem>>, vector<16x1xf32>,
    } else {
    }
    %c0 = arith.constant 0 : index
    %c0_1 = arith.constant 0 : index
    %3 = vector.load %arg3[%c0, %c0_1] : memref<16x32xf32, #tpu.memory_space<vmem>>, vector<16x32xf32>
    %c0_2 = arith.constant 0 : index
    %c0_3 = arith.constant 0 : index
    %4 = vector.load %arg4[%c0_2, %c0_3] : memref<32x16xf32, #tpu.memory_space<vmem>>, vector<32x16xf32>
    %cst = arith.constant dense<0.000000e+00> : vector<16x16xf32>
    %5 = tpu.matmul %3, %4, %cst {dimension_numbers = #tpu.dot_dimension_numbers<[1], [0], [0], [1], [0, 0, 1, 1], [], []>} : vector<16x32xf32>, vector<32x16xf32>, vector<16x16xf32> -> vector<16x16xf32>
    %6 = tpu.iota {dimensions = array<i32: 0>} : vector<16x16xi32>
    %c16_i32 = arith.constant 16 : i32
    %7 = arith.muli %arg0, %c16_i32 : i32
    %8 = vector.broadcast %7 : i32 to vector<16x16xi32>
    %9 = arith.addi %6, %8 : vector<16x16xi32>
    %10 = tpu.iota {dimensions = array<i32: 1>} : vector<16x16xi32>
    %c16_i32_4 = arith.constant 16 : i32
    %11 = arith.muli %arg1, %c16_i32_4 : i32
    %12 = vector.broadcast %11 : i32 to vector<16x16xi32>
    %13 = arith.addi %10, %12 : vector<16x16xi32>
    %14 = arith.cmpi eq, %9, %13 : vector<16x16xi32>
    %15 = math.exp %5 : vector<16x16xf32>
    %cst_5 = arith.constant 0.000000e+00 : f32
    %16 = vector.broadcast %cst_5 : f32 to vector<16x16xf32>
    %17 = arith.select %14, %16, %15 : vector<16x16xi1>, vector<16x16xf32>
    %c0_6 = arith.constant 0 : index
    %c0_7 = arith.constant 0 : index
    %18 = vector.load %arg6[%c0_6, %c0_7] : memref<16x1xf32, #tpu.memory_space<vmem>>, vector<16x1xf32>
    %cst_8 = arith.constant dense<0.000000e+00> : vector<16xf32>
    %19 = vector.multi_reduction <add>, %17, %cst_8 [1] : vector<16x16xf32> to vector<16xf32>
    %20 = vector.shape_cast %19 : vector<16xf32> to vector<16x1xf32>
    %21 = arith.addf %18, %20 : vector<16x1xf32>
    %c0_9 = arith.constant 0 : index
    %c0_10 = arith.constant 0 : index
    %22 = vector.load %arg6[%c0_9, %c0_10] : memref<16x1xf32, #tpu.memory_space<vmem>>, vector<16x1xf32>
    tpu.vector_store %arg6[%c0_9, %c0_10], %21 {strides = array<i32>} : memref<16x1xf32, #tpu.memory_space<vmem>>, vector<16x1xf32>,
    %c0_i32_11 = arith.constant 0 : i32
    %23 = arith.cmpi eq, %arg1, %c0_i32_11 : i32
    %24 = arith.extui %23 : i1 to i32
    %c0_i32_12 = arith.constant 0 : i32
    %25 = arith.cmpi ne, %24, %c0_i32_12 : i32
    scf.if %25 {
      %c0_13 = arith.constant 0 : index
      %c0_14 = arith.constant 0 : index
      %26 = vector.load %arg6[%c0_13, %c0_14] : memref<16x1xf32, #tpu.memory_space<vmem>>, vector<16x1xf32>
      %27 = math.log %26 : vector<16x1xf32>
      %c0_15 = arith.constant 0 : index
      %c0_16 = arith.constant 0 : index
      %28 = vector.load %arg2[%c0_15, %c0_16] : memref<16x1xf32, #tpu.memory_space<vmem>>, vector<16x1xf32>
      %29 = arith.subf %27, %28 : vector<16x1xf32>
      %c0_17 = arith.constant 0 : index
      %c0_18 = arith.constant 0 : index
      %30 = vector.load %arg5[%c0_17, %c0_18] : memref<16x1xf32, #tpu.memory_space<vmem>>, vector<16x1xf32>
      tpu.vector_store %arg5[%c0_17, %c0_18], %29 {strides = array<i32>} : memref<16x1xf32, #tpu.memory_space<vmem>>, vector<16x1xf32>,
    } else {
    }
    return
  }
  func.func @transform_0(%arg0: i32, %arg1: i32) -> (i32, i32) {
    %c0_i32 = arith.constant 0 : i32
    %c0_i32_0 = arith.constant 0 : i32
    return %arg0, %c0_i32 : i32, i32
  }
  func.func @transform_1(%arg0: i32, %arg1: i32) -> (i32, i32) {
    %c0_i32 = arith.constant 0 : i32
    %c0_i32_0 = arith.constant 0 : i32
    return %arg0, %c0_i32 : i32, i32
  }
  func.func @transform_2(%arg0: i32, %arg1: i32) -> (i32, i32) {
    %c0_i32 = arith.constant 0 : i32
    %c0_i32_0 = arith.constant 0 : i32
    return %c0_i32, %arg1 : i32, i32
  }
  func.func @transform_3(%arg0: i32, %arg1: i32) -> (i32, i32) {
    %c0_i32 = arith.constant 0 : i32
    %c0_i32_0 = arith.constant 0 : i32
    return %arg0, %c0_i32 : i32, i32
  }
}

</mosaic_0001>

<llo_original>
// kernel: tpu_custom_call.1
$region0: #{tpu_custom_call.1}
  #allocation0 [shape = 'u32[]', space=smem, size = 0x4, offset = 0x4, fixed_abs, tag = 'smem constant byte address 0x4 - core index']
  #allocation1 [shape = 'u32[144,128]{1,0:T(1,128)}', space=vmem, size = 0x12000, scoped, tag = 'internal scratch']
  #allocation2 [shape = 'f32[16,1]{1,0:T(8,128)}', space=vmem, size = 0x2000, scoped, tag = 'scratch operand']
  %s0 = inlined_call_operand.vmem [shape: f32[16,1], index: 0, kind: input, shape index: {}]
  %s1 = inlined_call_operand.vmem [shape: f32[16,32], index: 1, kind: input, shape index: {}]
  %s2 = inlined_call_operand.vmem [shape: f32[32,16], index: 2, kind: input, shape index: {}]
  %s3 = inlined_call_operand.vmem [shape: f32[16,1], index: 3, kind: output, shape index: {}]
  %s4 = sld [smem:[#allocation0]]
  $region30: #{tpu_custom_call.1} parent=0
    _
  %s6 = ssub.s32 1, %s4
  %s7 = scalar_select 0, %s6, %s4
  // Predicated region
  $region2: #{tpu_custom_call.1} parent=0 // pred_check
    _
  $region3: #{tpu_custom_call.1} parent=0 // pred_check_branch
    %9 = sbr.rel (0) target = $region5
  $region4: #{tpu_custom_call.1} parent=0 // pred_region
    _
  $region5: #{tpu_custom_call.1} parent=0 // pred_fallthru
    _
  // Predicated region
  $region6: #{tpu_custom_call.1} parent=0 // pred_check
    _
  $region7: #{tpu_custom_call.1} parent=0 // pred_check_branch
    %11 = sbr.rel (0) target = $region9
  $region8: #{tpu_custom_call.1} parent=0 // pred_region
    _
  $region9: #{tpu_custom_call.1} parent=0 // pred_fallthru
    _
  // Predicated region
  $region10: #{tpu_custom_call.1} parent=0 // pred_check
    _
  $region11: #{tpu_custom_call.1} parent=0 // pred_check_branch
    %13 = sbr.rel (0) target = $region13
  $region12: #{tpu_custom_call.1} parent=0 // pred_region
    _
  $region13: #{tpu_custom_call.1} parent=0 // pred_fallthru
    _
  %p14 = scmp.eq.s32.totalorder 0, 0
  // Predicated region
  $region14: #{tpu_custom_call.1} parent=0 // pred_check
    %p15 = pneg %p14
  $region15: #{tpu_custom_call.1} parent=0 // pred_check_branch
    %17 = sbr.rel (%p15) target = $region17
  $region16: #{tpu_custom_call.1} parent=0 // pred_region
    %vm18 = vcmask 7168
    %19 = vst.msk [vmem:[#allocation2] sm:$0xff] %vm18, 0.0
    %20 = vst.msk [vmem:[#allocation2 + $0x8] sm:$0xff] %vm18, 0.0
  $region17: #{tpu_custom_call.1} parent=0 // pred_fallthru
    _
  %v21 = vld [vmem:[%s1] sm:$0xff]
  %v22 = vld [vmem:[%s1 + $0x8] sm:$0xff]
  %v23 = vld [vmem:[%s2] sm:$0xff]
  %v24 = vld [vmem:[%s2 + $0x8] sm:$0xff]
  %v25 = vld [vmem:[%s2 + $0x10] sm:$0xff]
  %v26 = vld [vmem:[%s2 + $0x18] sm:$0xff]
  %vm27 = vcmask 261120
  %v29 = vsel %vm27, %v21, 0
  %v32 = vsel %vm27, %v22, 0
  %34 = vmatprep.subr.mxu0 0.0
  %35 = vmatpush1.msra.mxu0 0.0
  %36 = vmatprep.subr.mxu0 0.0
  %37 = vmatpush1.msra.mxu0 0.0
  %38 = vmatprep.subr.mxu0 0.0
  %39 = vmatpush1.msra.mxu0 0.0
  %40 = vmatprep.subr.mxu0 0.0
  %41 = vmatpush1.msra.mxu0 0.0
  %42 = vmatprep.subr.mxu0 0.0
  %43 = vmatpush1.msra.mxu0 0.0
  %44 = vmatprep.subr.mxu0 0.0
  %45 = vmatpush1.msra.mxu0 0.0
  %46 = vmatprep.subr.mxu0 0.0
  %47 = vmatpush1.msra.mxu0 0.0
  %48 = vmatprep.subr.mxu0 0.0
  %49 = vmatpush1.msra.mxu0 0.0
  %50 = vmatprep.subr.mxu0 0.0
  %51 = vmatpush1.msra.mxu0 0.0
  %52 = vmatprep.subr.mxu0 0.0
  %53 = vmatpush1.msra.mxu0 0.0
  %54 = vmatprep.subr.mxu0 0.0
  %55 = vmatpush1.msra.mxu0 0.0
  %56 = vmatprep.subr.mxu0 0.0
  %57 = vmatpush1.msra.mxu0 0.0
  %58 = vmatprep.subr.mxu0 0.0
  %59 = vmatpush1.msra.mxu0 %v26
  %60 = vmatprep.subr.mxu0 0.0
  %61 = vmatpush1.msra.mxu0 %v25
  %62 = vmatprep.subr.mxu0 0.0
  %63 = vmatpush1.msra.mxu0 %v24
  %64 = vmatprep.subr.mxu0 0.0
  %65 = vmatpush1.msra.mxu0 %v23
  %66 = vmatprep.subr.mxu0 0.0
  %67 = vmatpush2.msra.mxu0 0.0
  %68 = vmatprep.subr.mxu0 0.0
  %69 = vmatpush2.msra.mxu0 0.0
  %70 = vmatprep.subr.mxu0 0.0
  %71 = vmatpush2.msra.mxu0 0.0
  %72 = vmatprep.subr.mxu0 0.0
  %73 = vmatpush2.msra.mxu0 0.0
  %74 = vmatprep.subr.mxu0 0.0
  %75 = vmatpush2.msra.mxu0 0.0
  %76 = vmatprep.subr.mxu0 0.0
  %77 = vmatpush2.msra.mxu0 0.0
  %78 = vmatprep.subr.mxu0 0.0
  %79 = vmatpush2.msra.mxu0 0.0
  %80 = vmatprep.subr.mxu0 0.0
  %81 = vmatpush2.msra.mxu0 0.0
  %82 = vmatprep.subr.mxu0 0.0
  %83 = vmatpush2.msra.mxu0 0.0
  %84 = vmatprep.subr.mxu0 0.0
  %85 = vmatpush2.msra.mxu0 0.0
  %86 = vmatprep.subr.mxu0 0.0
  %87 = vmatpush2.msra.mxu0 0.0
  %88 = vmatprep.subr.mxu0 0.0
  %89 = vmatpush2.msra.mxu0 0.0
  %90 = vmatprep.subr.mxu0 0.0
  %91 = vmatpush2.msra.mxu0 0.0
  %92 = vmatprep.subr.mxu0 0.0
  %93 = vmatpush2.msra.mxu0 0.0
  %94 = vmatprep.subr.mxu0 0.0
  %95 = vmatpush2.msra.mxu0 0.0
  %96 = vmatprep.subr.mxu0 0.0
  %97 = vmatpush2.msra.mxu0 0.0
  %98 = vmatprep.mubr.f32.mxu0 0.0
  %99 = vmatmul.mubr.f32.gmra.mxu0 %v29
  %v100 = vpop.f32.mrf.mxu0
  %v101 = vadd.f32 0.0, %v100
  %v102 = vpop.f32.mrf.mxu0
  %103 = vmatprep.mubr.f32.mxu0 0.0
  %104 = vmatmul.mubr.f32.gmra.mxu0 %v32
  %v105 = vpop.f32.mrf.mxu0
  %v106 = vadd.f32 0.0, %v105
  %v107 = vpop.f32.mrf.mxu0
  %108 = vdwg.mxu0
  %v109 = vlaneseq
  %v110 = vshrl.u32 %v109, 7
  %v111 = vadd.s32 %v110, 8
  %s112 = smul.u32 0, 16
  %v113 = vstv %s112
  %v114 = vadd.s32 %v110, %v113
  %v115 = vadd.s32 %v111, %v113
  %v116 = vlaneseq
  %v117 = vand.u32 %v116, 127
  %s118 = smul.u32 0, 16
  %v119 = vstv %s118
  %v120 = vadd.s32 %v117, %v119
  %vm121 = vcmp.eq.s32.totalorder %v114, %v120
  %vm122 = vcmp.eq.s32.totalorder %v115, %v120
  %v123 = vmul.f32 %v101, 1.442695
  %v124 = vpow.pop %v123
  %v125 = vmul.f32 %v106, 1.442695
  %v126 = vpow.pop %v125
  %v127 = vsel %vm121, 0.0, %v124
  %v128 = vsel %vm122, 0.0, %v126
  %v129 = vld [vmem:[#allocation2] sm:$0xff]
  %v130 = vld [vmem:[#allocation2 + $0x8] sm:$0xff]
  %vm131 = vcmask 130048
  %v132 = vsel %vm131, %v127, 0.0
  %133 = vadd.xlane.f32.xlu0 %v132
  %v134 = vpop.xlane.xlu0 %133
  %v135 = vsel %vm131, %v128, 0.0
  %136 = vadd.xlane.f32.xlu0 %v135
  %v137 = vpop.xlane.xlu0 %136
  %v138 = vadd.f32 %v129, %v134
  %v139 = vadd.f32 %v130, %v137
  %vm140 = vcmask 7168
  %141 = vst.msk [vmem:[#allocation2] sm:$0xff] %vm140, %v138
  %142 = vst.msk [vmem:[#allocation2 + $0x8] sm:$0xff] %vm140, %v139
  // Predicated region
  $region18: #{tpu_custom_call.1} parent=0 // pred_check
    %p143 = pneg %p14
  $region19: #{tpu_custom_call.1} parent=0 // pred_check_branch
    %145 = sbr.rel (%p143) target = $region21
  $region20: #{tpu_custom_call.1} parent=0 // pred_region
    %v146 = vld [vmem:[#allocation2] sm:$0xff]
    %v147 = vld [vmem:[#allocation2 + $0x8] sm:$0xff]
    %v148 = vlog2.pop %v146
    %v149 = vmul.f32 %v148, 0.6931472
    %v150 = vlog2.pop %v147
    %v151 = vmul.f32 %v150, 0.6931472
    %v152 = vld [vmem:[%s0] sm:$0xff]
    %v153 = vld [vmem:[%s0 + $0x8] sm:$0xff]
    %v154 = vsub.f32 %v149, %v152
    %v155 = vsub.f32 %v151, %v153
    %156 = vst.msk [vmem:[%s3] sm:$0xff] %vm140, %v154
    %157 = vst.msk [vmem:[%s3 + $0x8] sm:$0xff] %vm140, %v155
  $region21: #{tpu_custom_call.1} parent=0 // pred_fallthru
    _
  // Predicated region
  $region22: #{tpu_custom_call.1} parent=0 // pred_check
    _
  $region23: #{tpu_custom_call.1} parent=0 // pred_check_branch
    %159 = sbr.rel (0) target = $region25
  $region24: #{tpu_custom_call.1} parent=0 // pred_region
    _
  $region25: #{tpu_custom_call.1} parent=0 // pred_fallthru
    _
  // Predicated region
  $region26: #{tpu_custom_call.1} parent=0 // pred_check
    _
  $region27: #{tpu_custom_call.1} parent=0 // pred_check_branch
    %161 = sbr.rel (0) target = $region29
  $region28: #{tpu_custom_call.1} parent=0 // pred_region
    _
  $region29: #{tpu_custom_call.1} parent=0 // pred_fallthru
    _

</llo_original>
